<compile_context>
chip_gen: v7x
topology: tpu7x:2x2x1
jax: 0.10.0
libtpu: 0.0.40
codegen_flags: <defaults>
</compile_context>

<pallas_src>
import math

import jax
import jax.numpy as jnp
from jax import lax
from jax.experimental import pallas as pl
from jax.experimental.pallas import tpu as pltpu


def _round_up(x, m):
    return ((x + m - 1) // m) * m


def temporal_embedding_kernel(idx_ref, w_ref, o_ref):
    # idx_ref: (TM, 3) int32 — combined (pre-offset) indices into the fused table.
    # w_ref  : (K, H)        — fused [month | day | weekday] table, zero-padded.
    # o_ref  : (TM, H)
    idx = idx_ref[...]
    tm = idx.shape[0]
    k = w_ref.shape[0]
    iota = lax.broadcasted_iota(jnp.int32, (tm, k), 1)           # (TM, K)
    # The three index ranges are disjoint -> OR + one cast is exact (3-hot).
    hot = ((iota == idx[:, 0:1])
           | (iota == idx[:, 1:2])
           | (iota == idx[:, 2:3]))                              # (TM, K) bool
    acc = jnp.dot(hot.astype(w_ref.dtype), w_ref[...],
                  preferred_element_type=jnp.float32)            # (TM, H) f32
    o_ref[...] = acc.astype(o_ref.dtype)


def temporal_embedding_residual_kernel(idx_ref, w_ref, r_ref, o_ref):
    # Same as above, plus a fused residual add before the store.
    idx = idx_ref[...]
    tm = idx.shape[0]
    k = w_ref.shape[0]
    iota = lax.broadcasted_iota(jnp.int32, (tm, k), 1)
    hot = ((iota == idx[:, 0:1])
           | (iota == idx[:, 1:2])
           | (iota == idx[:, 2:3]))
    acc = jnp.dot(hot.astype(w_ref.dtype), w_ref[...],
                  preferred_element_type=jnp.float32)
    o_ref[...] = (acc + r_ref[...].astype(jnp.float32)).astype(o_ref.dtype)


def temporal_embedding(x_mark, month_w, day_w, weekday_w, *,
                       residual=None, block_rows=512,
                       out_dtype=None, mxu_dtype=None):
    """x_mark: (B, L, 3) int — columns [month, day, weekday].

    month_w: (13, H), day_w: (32, H), weekday_w: (7, H) embedding tables.
    residual: optional (B, L, H) tensor fused-added before the store.
    out_dtype: output dtype (default: table dtype). mxu_dtype: optional dtype
    (e.g. jnp.bfloat16) for the mask x table matmul inputs.
    Returns (B, L, H) = month_emb + day_emb + weekday_emb (+ residual).
    """
    B, L, _ = x_mark.shape
    H = month_w.shape[1]
    N = B * L
    if out_dtype is None:
        out_dtype = month_w.dtype
    out_itemsize = jnp.dtype(out_dtype).itemsize

    n_month = month_w.shape[0]
    n_day = day_w.shape[0]
    n_weekday = weekday_w.shape[0]
    V = n_month + n_day + n_weekday                              # 52

    # Fused table; pad K to 128 so the (TM, K) mask LHS is lane-dense.
    table = jnp.concatenate([month_w, day_w, weekday_w], axis=0)  # (V, H)
    K = max(_round_up(V, 8), 128)
    if K != V:
        table = jnp.pad(table, ((0, K - V), (0, 0)))
    if mxu_dtype is not None:
        table = table.astype(mxu_dtype)

    # Offset each feature's index into the fused row space, flatten tokens.
    offsets = jnp.array([0, n_month, n_month + n_day], dtype=jnp.int32)
    idx = (x_mark.astype(jnp.int32) + offsets[None, None, :]).reshape(N, 3)

    # Row tiling: big tiles to amortize per-step overhead, but keep >=2 grid
    # steps (v7x megacore) and respect a VMEM budget.
    TM = min(block_rows, _round_up(N, 8))
    if N > 8:
        TM = min(TM, _round_up(pl.cdiv(N, 2), 8))                # >=2 grid steps
    TM = max(8, _round_up(TM, 8))

    def _vmem_bytes(tm):
        b = 2 * (tm * 3 * 4 + tm * H * out_itemsize)             # dbl-buffered idx + out
        if residual is not None:
            b += 2 * tm * H * residual.dtype.itemsize            # dbl-buffered residual
        b += 2 * K * H * table.dtype.itemsize                    # table
        b += tm * K * 4 + tm * H * 4                             # mask + f32 acc temporaries
        return b

    VMEM_BUDGET = 40 << 20                                       # headroom under v7x 64 MiB
    while TM > 8 and _vmem_bytes(TM) > VMEM_BUDGET:
        TM = max(8, _round_up(TM // 2, 8))

    grid_steps = pl.cdiv(N, TM)

    in_specs = [
        pl.BlockSpec((TM, 3), lambda i: (i, 0)),                 # token indices
        pl.BlockSpec((K, H), lambda i: (0, 0)),                  # fused table (resident)
    ]
    args = [idx, table]
    kernel = temporal_embedding_kernel
    res_bytes = 0
    if residual is not None:
        in_specs.append(pl.BlockSpec((TM, H), lambda i: (i, 0)))
        args.append(residual.reshape(N, H))
        kernel = temporal_embedding_residual_kernel
        res_bytes = N * H * residual.dtype.itemsize

    cost = pl.CostEstimate(
        flops=2 * grid_steps * TM * K * H,
        transcendentals=0,
        bytes_accessed=(N * 3 * 4 + K * H * table.dtype.itemsize
                        + N * H * out_itemsize + res_bytes),
    )

    out_flat = pl.pallas_call(
        kernel,
        out_shape=jax.ShapeDtypeStruct((N, H), out_dtype),       # ragged grid: no pad/slice
        grid_spec=pltpu.PrefetchScalarGridSpec(
            num_scalar_prefetch=0,
            grid=(grid_steps,),
            in_specs=in_specs,
            out_specs=pl.BlockSpec((TM, H), lambda i: (i, 0)),
        ),
        compiler_params=pltpu.CompilerParams(
            dimension_semantics=("parallel",),
            vmem_limit_bytes=48 << 20,
        ),
        cost_estimate=cost,
    )(*args)

    return out_flat.reshape(B, L, H)


def make_fixed_embedding(n_in, n_hidden):
    # FixedEmbedding: frozen sinusoidal table (matches the PyTorch module).
    position = jnp.arange(n_in, dtype=jnp.float32)[:, None]
    div_term = jnp.exp(jnp.arange(0, n_hidden, 2, dtype=jnp.float32)
                       * -(math.log(10000.0) / n_hidden))
    w = jnp.zeros((n_in, n_hidden), dtype=jnp.float32)
    w = w.at[:, 0::2].set(jnp.sin(position * div_term))
    w = w.at[:, 1::2].set(jnp.cos(position * div_term))
    return w


def reference(x_mark, month_w, day_w, weekday_w):
    # Pure-JAX reference of TemporalEmbedding.forward.
    idx = x_mark.astype(jnp.int32)
    month_x = jnp.take(month_w, idx[:, :, 0], axis=0)
    day_x = jnp.take(day_w, idx[:, :, 1], axis=0)
    weekday_x = jnp.take(weekday_w, idx[:, :, 2], axis=0)
    return weekday_x + day_x + month_x


if __name__ == "__main__":
    B, L, H = 2, 8, 32   # batch, seq, n_hidden

    key = jax.random.PRNGKey(0)
    k_m, k_d, k_w, k_r = jax.random.split(key, 4)
    month = jax.random.randint(k_m, (B, L), 0, 13, dtype=jnp.int32)
    day = jax.random.randint(k_d, (B, L), 0, 32, dtype=jnp.int32)
    weekday = jax.random.randint(k_w, (B, L), 0, 7, dtype=jnp.int32)
    # x_mark columns: [month, day, weekday] — matches the module's indexing.
    x_mark = jnp.stack([month, day, weekday], axis=-1)            # (B, L, 3)

    # embed_type='fixed' -> FixedEmbedding tables; a learned nn.Embedding
    # variant just passes different (trainable) tables to the same kernel.
    month_w = make_fixed_embedding(13, H)
    day_w = make_fixed_embedding(32, H)
    weekday_w = make_fixed_embedding(7, H)

    ref = reference(x_mark, month_w, day_w, weekday_w)

    # Exact path (f32 output, f32 MXU) — matches the module's forward.
    out = jax.block_until_ready(
        temporal_embedding(x_mark, month_w, day_w, weekday_w))
    assert out.shape == (B, L, H)
    assert jnp.allclose(out, ref, atol=1e-5, rtol=1e-5)

    # Fast path: fused residual add + bf16 output + bf16 MXU inputs.
    residual = jax.random.normal(k_r, (B, L, H), dtype=jnp.float32)
    out_bf16 = jax.block_until_ready(
        temporal_embedding(x_mark, month_w, day_w, weekday_w,
                           residual=residual,
                           out_dtype=jnp.bfloat16,
                           mxu_dtype=jnp.bfloat16))
    assert out_bf16.dtype == jnp.bfloat16
    assert jnp.allclose(out_bf16.astype(jnp.float32), ref + residual,
                        atol=5e-2, rtol=5e-2)

    print("KERNEL_OK")
</pallas_src>

<mosaic_0001>
module attributes {stable_mosaic.version = 11 : i64} {
  func.func @temporal_embedding_kernel(%arg0: i32, %arg1: memref<8x3xi32, #tpu.memory_space<vmem>>, %arg2: memref<128x32xf32, #tpu.memory_space<vmem>>, %arg3: memref<8x32xf32, #tpu.memory_space<vmem>>) attributes {dimension_semantics = [#tpu.dimension_semantics<parallel>], iteration_bounds = array<i64: 2>, scalar_prefetch = 0 : i64, scratch_operands = 0 : i64, tpu.core_type = #tpu.core_type<tc>, window_params = [{transform_indices = @transform_0, window_bounds = array<i64: 8, 3>}, {pipeline_mode = #tpu.pipeline_mode<synchronous>, transform_indices = @transform_1, window_bounds = array<i64: 128, 32>}, {transform_indices = @transform_2, window_bounds = array<i64: 8, 32>}]} {
    %c0 = arith.constant 0 : index
    %c0_0 = arith.constant 0 : index
    %0 = vector.load %arg1[%c0, %c0_0] : memref<8x3xi32, #tpu.memory_space<vmem>>, vector<8x3xi32>
    %1 = tpu.iota {dimensions = array<i32: 1>} : vector<8x128xi32>
    %2 = vector.extract_strided_slice %0 {offsets = [0, 0], sizes = [8, 1], strides = [1, 1]} : vector<8x3xi32> to vector<8x1xi32>
    %3 = vector.broadcast %2 : vector<8x1xi32> to vector<8x128xi32>
    %4 = arith.cmpi eq, %1, %3 : vector<8x128xi32>
    %5 = vector.extract_strided_slice %0 {offsets = [0, 1], sizes = [8, 1], strides = [1, 1]} : vector<8x3xi32> to vector<8x1xi32>
    %6 = vector.broadcast %5 : vector<8x1xi32> to vector<8x128xi32>
    %7 = arith.cmpi eq, %1, %6 : vector<8x128xi32>
    %8 = arith.ori %4, %7 : vector<8x128xi1>
    %9 = vector.extract_strided_slice %0 {offsets = [0, 2], sizes = [8, 1], strides = [1, 1]} : vector<8x3xi32> to vector<8x1xi32>
    %10 = vector.broadcast %9 : vector<8x1xi32> to vector<8x128xi32>
    %11 = arith.cmpi eq, %1, %10 : vector<8x128xi32>
    %12 = arith.ori %8, %11 : vector<8x128xi1>
    %13 = arith.extui %12 : vector<8x128xi1> to vector<8x128xi32>
    %14 = arith.sitofp %13 : vector<8x128xi32> to vector<8x128xf32>
    %c0_1 = arith.constant 0 : index
    %c0_2 = arith.constant 0 : index
    %15 = vector.load %arg2[%c0_1, %c0_2] : memref<128x32xf32, #tpu.memory_space<vmem>>, vector<128x32xf32>
    %cst = arith.constant dense<0.000000e+00> : vector<8x32xf32>
    %16 = tpu.matmul %14, %15, %cst {dimension_numbers = #tpu.dot_dimension_numbers<[1], [0], [0], [1], [0, 0, 1, 1], [], []>} : vector<8x128xf32>, vector<128x32xf32>, vector<8x32xf32> -> vector<8x32xf32>
    %c0_3 = arith.constant 0 : index
    %c0_4 = arith.constant 0 : index
    %17 = vector.load %arg3[%c0_3, %c0_4] : memref<8x32xf32, #tpu.memory_space<vmem>>, vector<8x32xf32>
    tpu.vector_store %arg3[%c0_3, %c0_4], %16 {strides = array<i32>} : memref<8x32xf32, #tpu.memory_space<vmem>>, vector<8x32xf32>,
    return
  }
  func.func @transform_0(%arg0: i32) -> (i32, i32) {
    %c0_i32 = arith.constant 0 : i32
    %c0_i32_0 = arith.constant 0 : i32
    return %arg0, %c0_i32 : i32, i32
  }
  func.func @transform_1(%arg0: i32) -> (i32, i32) {
    %c0_i32 = arith.constant 0 : i32
    %c0_i32_0 = arith.constant 0 : i32
    %c0_i32_1 = arith.constant 0 : i32
    return %c0_i32, %c0_i32_0 : i32, i32
  }
  func.func @transform_2(%arg0: i32) -> (i32, i32) {
    %c0_i32 = arith.constant 0 : i32
    %c0_i32_0 = arith.constant 0 : i32
    return %arg0, %c0_i32 : i32, i32
  }
}

</mosaic_0001>

<llo_original>
// kernel: tpu_custom_call.1
$region0: #{tpu_custom_call.1}
  #allocation0 [shape = 'u32[]', space=smem, size = 0x4, offset = 0x4, fixed_abs, tag = 'smem constant byte address 0x4 - core index']
  #allocation1 [shape = 'u32[144,128]{1,0:T(1,128)}', space=vmem, size = 0x12000, scoped, tag = 'internal scratch']
  %s0 = inlined_call_operand.vmem [shape: s32[16,3], index: 0, kind: input, shape index: {}]
  %s1 = inlined_call_operand.vmem [shape: f32[128,32], index: 1, kind: input, shape index: {}]
  %s2 = inlined_call_operand.hbm [shape: f32[16,32], index: 2, kind: output, shape index: {}]
  %s3 = sld [smem:[#allocation0]]
  $region41: #{tpu_custom_call.1} parent=0
    _
  %s5 = ssub.s32 1, %s3
  %s6 = scalar_select 0, %s5, %s3
  $region1: #{tpu_custom_call.1} parent=0
    #allocation2 [shape = 'u8[8192]{0}', space=vmem, size = 0x2000, scoped, tag = 'output window, operand 0']
    #allocation3 [shape = 's32[2]{0}', space=sflag, size = 0x8, scoped, tag = 'scoped memory for tpu_custom_call.1']
    %7 = vsyncpa [#allocation3], 0
    %s8 = scalar_lea.sflag [#allocation3], 1
    %9 = vsyncpa %s8, 0
    loop: start=0, step=1, limit=4
    $region2: #{tpu_custom_call.1} parent=1 // loop_pre_header
      _
    $region3: #{tpu_custom_call.1} parent=1 // loop_header
      %s11 = sphi 0, %s15
      %p12 = scmp.ge.s32.totalorder %s11, 4
      %s21 = sphi 0, %s23
      %s24 = sphi 0, %s21
      %s25 = sphi 0, %s24
      %s41 = sphi 0, %s25
      %s45 = sphi 0, %s45
      %s47 = sphi 0, %s45
      %s48 = sphi 0, %s47
      %s62 = sphi 0, %s48
      %s68 = sphi 0, %s70
      %s71 = sphi 0, %s68
      %s72 = sphi 0, %s71
      %s88 = sphi 0, %s72
    $region4: #{tpu_custom_call.1} parent=1 // loop_header_branch
      %14 = sbr.rel (%p12) target = $region8
    $region5: #{tpu_custom_call.1} parent=1 // loop_body
      %s16 = ssub.s32 %s11, 1
      %s17 = ssub.s32 %s11, 2
      %s18 = sadd.s32 %s11, 1
      %s19 = ssub.s32 %s11, %s18
      %p20 = scmp.eq.s32.totalorder %s19, 0
      %s22 = sadd.s32 %s21, 1
      %s23 = scalar_select %p20, %s21, %s22
      %p26 = pneg %p20
      %p27 = scmp.eq.s32.totalorder %s11, 1
      %p28 = por %p26, %p27
      %p29 = scmp.ne.s32.totalorder %s21, %s24
      %p30 = scmp.eq.s32.totalorder %s11, 0
      %p31 = por %p29, %p30
      %p32 = scmp.ne.s32.totalorder %s21, %s24
      %p33 = scmp.eq.s32.totalorder %s16, 1
      %p34 = por %p32, %p33
      %p35 = scmp.ne.s32.totalorder %s24, %s25
      %p36 = scmp.eq.s32.totalorder %s16, 0
      %p37 = por %p35, %p36
      %p38 = scmp.ne.s32.totalorder %s24, %s25
      %p39 = scmp.eq.s32.totalorder %s17, 1
      %p40 = por %p38, %p39
      %p42 = scmp.ne.s32.totalorder %s25, %s41
      %p43 = scmp.eq.s32.totalorder %s17, 0
      %p44 = por %p42, %p43
      %s46 = sadd.s32 %s45, 1
      %p49 = scmp.eq.s32.totalorder %s11, 1
      %p50 = scmp.ne.s32.totalorder %s45, %s47
      %p51 = scmp.eq.s32.totalorder %s11, 0
      %p52 = por %p50, %p51
      %p53 = scmp.ne.s32.totalorder %s45, %s47
      %p54 = scmp.eq.s32.totalorder %s16, 1
      %p55 = por %p53, %p54
      %p56 = scmp.ne.s32.totalorder %s47, %s48
      %p57 = scmp.eq.s32.totalorder %s16, 0
      %p58 = por %p56, %p57
      %p59 = scmp.ne.s32.totalorder %s47, %s48
      %p60 = scmp.eq.s32.totalorder %s17, 1
      %p61 = por %p59, %p60
      %p63 = scmp.ne.s32.totalorder %s48, %s62
      %p64 = scmp.eq.s32.totalorder %s17, 0
      %p65 = por %p63, %p64
      %s66 = ssub.s32 %s11, %s18
      %p67 = scmp.eq.s32.totalorder %s66, 0
      %s69 = sadd.s32 %s68, 1
      %s70 = scalar_select %p67, %s68, %s69
      %p73 = pneg %p67
      %p74 = scmp.eq.s32.totalorder %s11, 1
      %p75 = por %p73, %p74
      %p76 = scmp.ne.s32.totalorder %s68, %s71
      %p77 = scmp.eq.s32.totalorder %s11, 0
      %p78 = por %p76, %p77
      %p79 = scmp.ne.s32.totalorder %s68, %s71
      %p80 = scmp.eq.s32.totalorder %s16, 1
      %p81 = por %p79, %p80
      %p82 = scmp.ne.s32.totalorder %s71, %s72
      %p83 = scmp.eq.s32.totalorder %s16, 0
      %p84 = por %p82, %p83
      %p85 = scmp.ne.s32.totalorder %s71, %s72
      %p86 = scmp.eq.s32.totalorder %s17, 1
      %p87 = por %p85, %p86
      %p89 = scmp.ne.s32.totalorder %s72, %s88
      %p90 = scmp.eq.s32.totalorder %s17, 0
      %p91 = por %p89, %p90
      %p92 = scmp.le.s32.totalorder 1, %s11
      %p93 = scmp.lt.s32.totalorder %s11, 3
      %p94 = pnand %p92, %p93
      %p95 = pneg %p94
      // Predicated region
      $region9: #{tpu_custom_call.1} parent=5 // pred_check
        _
      $region10: #{tpu_custom_call.1} parent=5 // pred_check_branch
        %97 = sbr.rel (%p94) target = $region12
      $region11: #{tpu_custom_call.1} parent=5 // pred_region
        %s98 = ssub.s32 %s11, 1
        // Predicated region
        $region13: #{tpu_custom_call.1} parent=11 // pred_check
          %p99 = pneg %p58
        $region14: #{tpu_custom_call.1} parent=11 // pred_check_branch
          %101 = sbr.rel (%p99) target = $region16
        $region15: #{tpu_custom_call.1} parent=11 // pred_region
          _
        $region16: #{tpu_custom_call.1} parent=11 // pred_fallthru
          _
      $region12: #{tpu_custom_call.1} parent=5 // pred_fallthru
        _
      %p102 = scmp.lt.s32.totalorder %s11, 2
      // Predicated region
      $region17: #{tpu_custom_call.1} parent=5 // pred_check
        %p103 = pneg %p102
      $region18: #{tpu_custom_call.1} parent=5 // pred_check_branch
        %105 = sbr.rel (%p103) target = $region20
      $region19: #{tpu_custom_call.1} parent=5 // pred_region
        // Predicated region
        $region21: #{tpu_custom_call.1} parent=19 // pred_check
          %p106 = pneg %p31
        $region22: #{tpu_custom_call.1} parent=19 // pred_check_branch
          %108 = sbr.rel (%p106) target = $region24
        $region23: #{tpu_custom_call.1} parent=19 // pred_region
          %p109 = scmp.lt.s32.totalorder %s11, 1
          %s110 = scalar_select %p109, %s11, 1
          %s111 = smul.addr %s110, 8
          %s112 = scalar_lea.vmem %s0, %s111
        $region24: #{tpu_custom_call.1} parent=19 // pred_fallthru
          _
      $region20: #{tpu_custom_call.1} parent=5 // pred_fallthru
        _
      %p113 = scmp.le.s32.totalorder 1, %s11
      %p114 = scmp.lt.s32.totalorder %s11, 3
      %p115 = pnand %p113, %p114
      %p116 = pneg %p115
      // Predicated region
      $region25: #{tpu_custom_call.1} parent=5 // pred_check
        _
      $region26: #{tpu_custom_call.1} parent=5 // pred_check_branch
        %118 = sbr.rel (%p115) target = $region28
      $region27: #{tpu_custom_call.1} parent=5 // pred_region
        %s119 = ssub.s32 %s11, 1
        %p120 = scmp.lt.s32.totalorder %s16, 1
        %s121 = scalar_select %p120, %s16, 1
        %s122 = smul.addr %s121, 8
        %s123 = scalar_lea.vmem %s0, %s122
        %p124 = pneg %p37
        %p125 = pneg %p34
        %p126 = pneg %p58
        %p127 = pneg %p55
        %p128 = pneg %p84
        %p129 = pneg %p81
        %s130 = sand.u32 %s71, 1
        %s131 = scalar_lea.sflag [#allocation3], %s130
        %s132 = sand.u32 %s71, 1
        %s133 = smul.addr %s132, 8
        %s134 = scalar_lea.vmem [#allocation2], %s133
        %p135 = scmp.lt.s32.totalorder %s16, 1
        %s136 = scalar_select %p135, %s16, 1
        %s137 = smul.addr %s136, 8
        %s138 = scalar_lea.vmem %s0, %s137
        %v139 = vld [vmem:[%s138] sm:$0xff]
        %v140 = vlaneseq
        %v141 = vand.u32 %v140, 127
        %142 = vset.pattern.permute.xlu0 0
        %143 = vperm.xlu0 %142, %v139
        %v144 = vpop.permute.xlu0 %143
        %vm145 = vcmp.eq.s32.totalorder %v141, %v144
        %146 = vset.pattern.permute.xlu0 1
        %147 = vperm.xlu0 %146, %v139
        %v148 = vpop.permute.xlu0 %147
        %vm149 = vcmp.eq.s32.totalorder %v141, %v148
        %vm150 = vmor %vm145, %vm149
        %151 = vset.pattern.permute.xlu0 2
        %152 = vperm.xlu0 %151, %v139
        %v153 = vpop.permute.xlu0 %152
        %vm154 = vcmp.eq.s32.totalorder %v141, %v153
        %vm155 = vmor %vm150, %vm154
        %v156 = vsel %vm155, 1, 0
        %v157 = vcvt.s32.f32 %v156
        %v158 = vld [vmem:[%s1] sm:$0xff]
        %v159 = vld [vmem:[%s1 + $0x8] sm:$0xff]
        %v160 = vld [vmem:[%s1 + $0x10] sm:$0xff]
        %v161 = vld [vmem:[%s1 + $0x18] sm:$0xff]
        %v162 = vld [vmem:[%s1 + $0x20] sm:$0xff]
        %v163 = vld [vmem:[%s1 + $0x28] sm:$0xff]
        %v164 = vld [vmem:[%s1 + $0x30] sm:$0xff]
        %v165 = vld [vmem:[%s1 + $0x38] sm:$0xff]
        %v166 = vld [vmem:[%s1 + $0x40] sm:$0xff]
        %v167 = vld [vmem:[%s1 + $0x48] sm:$0xff]
        %v168 = vld [vmem:[%s1 + $0x50] sm:$0xff]
        %v169 = vld [vmem:[%s1 + $0x58] sm:$0xff]
        %v170 = vld [vmem:[%s1 + $0x60] sm:$0xff]
        %v171 = vld [vmem:[%s1 + $0x68] sm:$0xff]
        %v172 = vld [vmem:[%s1 + $0x70] sm:$0xff]
        %v173 = vld [vmem:[%s1 + $0x78] sm:$0xff]
        %174 = vmatprep.subr.mxu0 0.0
        %175 = vmatpush1.msra.mxu0 %v158
        %176 = vmatprep.subr.mxu0 0.0
        %177 = vmatpush1.msra.mxu0 %v159
        %178 = vmatprep.subr.mxu0 0.0
        %179 = vmatpush1.msra.mxu0 %v160
        %180 = vmatprep.subr.mxu0 0.0
        %181 = vmatpush1.msra.mxu0 %v161
        %182 = vmatprep.subr.mxu0 0.0
        %183 = vmatpush1.msra.mxu0 %v162
        %184 = vmatprep.subr.mxu0 0.0
        %185 = vmatpush1.msra.mxu0 %v163
        %186 = vmatprep.subr.mxu0 0.0
        %187 = vmatpush1.msra.mxu0 %v164
        %188 = vmatprep.subr.mxu0 0.0
        %189 = vmatpush1.msra.mxu0 %v165
        %190 = vmatprep.subr.mxu0 0.0
        %191 = vmatpush1.msra.mxu0 %v166
        %192 = vmatprep.subr.mxu0 0.0
        %193 = vmatpush1.msra.mxu0 %v167
        %194 = vmatprep.subr.mxu0 0.0
        %195 = vmatpush1.msra.mxu0 %v168
        %196 = vmatprep.subr.mxu0 0.0
        %197 = vmatpush1.msra.mxu0 %v169
        %198 = vmatprep.subr.mxu0 0.0
        %199 = vmatpush1.msra.mxu0 %v170
        %200 = vmatprep.subr.mxu0 0.0
        %201 = vmatpush1.msra.mxu0 %v171
        %202 = vmatprep.subr.mxu0 0.0
        %203 = vmatpush1.msra.mxu0 %v172
        %204 = vmatprep.subr.mxu0 0.0
        %205 = vmatpush1.msra.mxu0 %v173
        %206 = vmatprep.subr.mxu0 0.0
        %207 = vmatpush1.msra.mxu0 0.0
        %208 = vmatprep.subr.mxu0 0.0
        %209 = vmatpush1.msra.mxu0 0.0
        %210 = vmatprep.subr.mxu0 0.0
        %211 = vmatpush1.msra.mxu0 0.0
        %212 = vmatprep.subr.mxu0 0.0
        %213 = vmatpush1.msra.mxu0 0.0
        %214 = vmatprep.subr.mxu0 0.0
        %215 = vmatpush1.msra.mxu0 0.0
        %216 = vmatprep.subr.mxu0 0.0
        %217 = vmatpush1.msra.mxu0 0.0
        %218 = vmatprep.subr.mxu0 0.0
        %219 = vmatpush1.msra.mxu0 0.0
        %220 = vmatprep.subr.mxu0 0.0
        %221 = vmatpush1.msra.mxu0 0.0
        %222 = vmatprep.subr.mxu0 0.0
        %223 = vmatpush1.msra.mxu0 0.0
        %224 = vmatprep.subr.mxu0 0.0
        %225 = vmatpush1.msra.mxu0 0.0
        %226 = vmatprep.subr.mxu0 0.0
        %227 = vmatpush1.msra.mxu0 0.0
        %228 = vmatprep.subr.mxu0 0.0
        %229 = vmatpush1.msra.mxu0 0.0
        %230 = vmatprep.subr.mxu0 0.0
        %231 = vmatpush1.msra.mxu0 0.0
        %232 = vmatprep.subr.mxu0 0.0
        %233 = vmatpush1.msra.mxu0 0.0
        %234 = vmatprep.subr.mxu0 0.0
        %235 = vmatpush1.msra.mxu0 0.0
        %236 = vmatprep.subr.mxu0 0.0
        %237 = vmatpush1.msra.mxu0 0.0
        %238 = vmatprep.mubr.f32.mxu0 0.0
        %239 = vmatmul.mubr.f32.gmra.mrb[0].mxu0 %v157
        %v240 = vpop.f32.mrb[0].mxu0
        %v241 = vadd.f32 0.0, %v240
        %v242 = vpop.f32.mrb[0].mxu0
        %243 = vdwg.mxu0
        %vm244 = vcmask 261120
        %245 = vst.msk [vmem:[%s134] sm:$0xff] %vm244, %v241
        %s246 = sand.u32 %s71, 1
        %s247 = scalar_lea.sflag [#allocation3], %s246
        %s248 = sand.u32 %s71, 1
        %s249 = smul.addr %s248, 8
        %s250 = scalar_lea.vmem [#allocation2], %s249
        // Predicated region
        $region29: #{tpu_custom_call.1} parent=27 // pred_check
          %p251 = pneg %p81
        $region30: #{tpu_custom_call.1} parent=27 // pred_check_branch
          %253 = sbr.rel (%p251) target = $region32
        $region31: #{tpu_custom_call.1} parent=27 // pred_region
          %s255 = ssub.s32 128, 128
          %256 = vsyncadd %s247, %s255
          %s257 = smul.addr %s16, 128
          %s258 = scalar_lea.hbm %s2, %s257
          %s260 = sshll.u32 %s250, 4
          %s261 = int_to_ptr.vmem [resolvable:$true] %s260
          %263 = dma.vmem_to_hbm [thread:$0]  %s261, 128, %s258, %s247
        $region32: #{tpu_custom_call.1} parent=27 // pred_fallthru
          _
      $region28: #{tpu_custom_call.1} parent=5 // pred_fallthru
        _
      %p264 = scmp.le.s32.totalorder 2, %s11
      // Predicated region
      $region33: #{tpu_custom_call.1} parent=5 // pred_check
        %p265 = pneg %p264
      $region34: #{tpu_custom_call.1} parent=5 // pred_check_branch
        %267 = sbr.rel (%p265) target = $region36
      $region35: #{tpu_custom_call.1} parent=5 // pred_region
        %s268 = ssub.s32 %s11, 2
        // Predicated region
        $region37: #{tpu_custom_call.1} parent=35 // pred_check
          %p269 = pneg %p87
        $region38: #{tpu_custom_call.1} parent=35 // pred_check_branch
          %271 = sbr.rel (%p269) target = $region40
        $region39: #{tpu_custom_call.1} parent=35 // pred_region
          %s272 = sand.u32 %s72, 1
          %s273 = scalar_lea.sflag [#allocation3], %s272
          %s274 = sand.u32 %s72, 1
          %s275 = smul.addr %s274, 8
          %s276 = scalar_lea.vmem [#allocation2], %s275
          %277 = dma.done %s273, 128
        $region40: #{tpu_custom_call.1} parent=35 // pred_fallthru
          _
      $region36: #{tpu_custom_call.1} parent=5 // pred_fallthru
        _
    $region6: #{tpu_custom_call.1} parent=1 // loop_footer
      %s15 = sadd.s32 1, %s11
    $region7: #{tpu_custom_call.1} parent=1 // loop_footer_branch
      %10 = sbr.rel target = $region3
    $region8: #{tpu_custom_call.1} parent=1 // loop_exit
      _
    %278 = vsyncpa [#allocation3], 1
    %s279 = scalar_lea.sflag [#allocation3], 1
    %280 = vsyncpa %s279, 1

</llo_original>
